<compile_context>
chip_gen: v7x
topology: tpu7x:2x2x1
jax: 0.10.0
libtpu: 0.0.40
codegen_flags: <defaults>
</compile_context>

<pallas_src>
import jax
import jax.numpy as jnp
import numpy as np
from jax import lax
from jax.experimental import pallas as pl
from jax.experimental.pallas import tpu as pltpu

# ---- problem sizes (small, consistent with the module) -----------------------
B = 2            # batch
T = 8            # sequence length
D_IN = 32        # d_in
D_OUT = 32       # d_out (must equal d_in for the residual x + attention(x))
NUM_HEADS = 4
HEAD_DIM = D_OUT // NUM_HEADS
ROWS = B * T                  # 16 token rows
AROWS = NUM_HEADS * B * T     # 64 attention rows, ordered (head, batch, t)
QKV_BIAS = True
RMS_EPS = 1e-5
NEG = -1e30

assert D_IN == D_OUT, "residual x + attention(x) requires d_in == d_out"

# ---- single parameter-slab layout (one lane-dense f32 array => one DMA) ------
# columns (lanes)                                rows
C_WQKV0, C_WQKV1 = 0, 3 * D_OUT     # 0:96      0:32   fused W_qkv (Q pre-scaled)
C_WO0,   C_WO1   = 96, 128          # 96:128    0:32   attention out-projection
C_WFF0,  C_WFF1  = 128, 160         # 128:160   0:32   feed-forward weight
C_MSK0,  C_MSK1  = 192, 256         # 192:256   0:64   additive block-causal mask
VEC_ROW = 64                        # single bias/gamma row:
C_BQKV0, C_BQKV1 = 0, 96            #   qkv bias (Q part pre-scaled)
C_BO0,   C_BO1   = 96, 128          #   out-proj bias
C_GA0,   C_GA1   = 128, 160         #   attn RMSNorm gamma
C_GF0,   C_GF1   = 160, 192         #   ffn  RMSNorm gamma
SLAB_SHAPE = (65, 256)


def _rmsnorm(h, gamma):
    # h: (rows, D) float32, gamma: (1, D)
    ms = jnp.mean(h * h, axis=-1, keepdims=True)
    return h * lax.rsqrt(ms + RMS_EPS) * gamma


def transformer_block_kernel(x_ref, slab_ref, o_ref):
    x = x_ref[...]                                              # (16, 32)

    # Static ref-slices into the single parameter slab (no extra DMAs).
    w_qkv = slab_ref[0:D_IN, C_WQKV0:C_WQKV1]                   # (32, 96)
    b_qkv = slab_ref[VEC_ROW:VEC_ROW + 1, C_BQKV0:C_BQKV1]      # (1, 96)
    w_o   = slab_ref[0:D_OUT, C_WO0:C_WO1]                      # (32, 32)
    b_o   = slab_ref[VEC_ROW:VEC_ROW + 1, C_BO0:C_BO1]          # (1, 32)
    w_ff  = slab_ref[0:D_OUT, C_WFF0:C_WFF1]                    # (32, 32)
    g_at  = slab_ref[VEC_ROW:VEC_ROW + 1, C_GA0:C_GA1]          # (1, 32)
    g_ff  = slab_ref[VEC_ROW:VEC_ROW + 1, C_GF0:C_GF1]          # (1, 32)
    mask  = slab_ref[0:AROWS, C_MSK0:C_MSK1]                    # (64, 64)

    # ---- fused QKV projection: ONE MXU push ----------------------------------
    qkv = jnp.dot(x, w_qkv, preferred_element_type=jnp.float32) + b_qkv   # (16, 96)

    # ---- stack all (head, batch) groups along sublanes: rows = (h, b, t) -----
    def stack_heads(base):
        return jnp.concatenate(
            [qkv[:, base + h * HEAD_DIM: base + (h + 1) * HEAD_DIM]
             for h in range(NUM_HEADS)], axis=0)                # (64, 8)

    q = stack_heads(0)            # already scaled by 1/sqrt(head_dim)
    k = stack_heads(D_OUT)
    v = stack_heads(2 * D_OUT)

    # ---- fused attention over all 64 rows: 2 MXU pushes -----------------------
    s = lax.dot_general(q, k, (((1,), (1,)), ((), ())),
                        preferred_element_type=jnp.float32)     # (64, 64)
    s = s + mask                                                # block-diag + causal
    p = jnp.exp(s - jnp.max(s, axis=-1, keepdims=True))
    p = p / jnp.sum(p, axis=-1, keepdims=True)                  # exact divide
    ctx = jnp.dot(p, v, preferred_element_type=jnp.float32)     # (64, 8)

    # ---- heads back along lanes: (64,8) -> (16,32); feature index = h*hd + d --
    ctx2d = jnp.concatenate(
        [ctx[h * ROWS:(h + 1) * ROWS, :] for h in range(NUM_HEADS)], axis=1)

    # ---- output projection + residual + RMSNorm, FF + residual + RMSNorm ------
    attn = jnp.dot(ctx2d, w_o, preferred_element_type=jnp.float32) + b_o
    # TODO(synk): dropout is a no-op in eval mode; not implemented in-kernel.
    y1 = _rmsnorm(x + attn, g_at)
    ff = jnp.dot(y1, w_ff, preferred_element_type=jnp.float32)
    y2 = _rmsnorm(y1 + ff, g_ff)

    o_ref[...] = y2.astype(o_ref.dtype)


def pack_params(p):
    """One-time host-side packing of ALL module weights (plus the static additive
    attention mask) into a single lane-dense f32 slab -> one parameter DMA."""
    scale = 1.0 / float(np.sqrt(HEAD_DIM))
    slab = np.zeros(SLAB_SHAPE, np.float32)

    # Fused QKV weight/bias, heads packed head-major along lanes (matches the
    # reference's reshape to (B,T,H,hd)); 1/sqrt(hd) folded into the Q slice.
    slab[0:D_IN, C_WQKV0:C_WQKV0 + D_OUT] = np.asarray(p["wq"]) * scale
    slab[0:D_IN, C_WQKV0 + D_OUT:C_WQKV0 + 2 * D_OUT] = np.asarray(p["wk"])
    slab[0:D_IN, C_WQKV0 + 2 * D_OUT:C_WQKV0 + 3 * D_OUT] = np.asarray(p["wv"])
    slab[VEC_ROW, C_BQKV0:C_BQKV0 + D_OUT] = np.asarray(p["bq"])[0] * scale
    slab[VEC_ROW, C_BQKV0 + D_OUT:C_BQKV0 + 2 * D_OUT] = np.asarray(p["bk"])[0]
    slab[VEC_ROW, C_BQKV0 + 2 * D_OUT:C_BQKV0 + 3 * D_OUT] = np.asarray(p["bv"])[0]

    slab[0:D_OUT, C_WO0:C_WO1] = np.asarray(p["wo"])
    slab[VEC_ROW, C_BO0:C_BO1] = np.asarray(p["bo"])[0]
    slab[0:D_OUT, C_WFF0:C_WFF1] = np.asarray(p["wff"])
    slab[VEC_ROW, C_GA0:C_GA1] = np.asarray(p["g_attn"])[0]
    slab[VEC_ROW, C_GF0:C_GF1] = np.asarray(p["g_ffn"])[0]

    # Static additive mask for the fused attention: rows ordered (h, b, t);
    # row i may attend to col j iff same (h, b) group and causal within the group.
    i = np.arange(AROWS)
    allow = (i[:, None] // T == i[None, :] // T) & (i[None, :] % T <= i[:, None] % T)
    slab[0:AROWS, C_MSK0:C_MSK1] = np.where(allow, 0.0, NEG).astype(np.float32)

    return jnp.asarray(slab)


def transformer_block(x, slab):
    """x: (B, T, D_IN) float32; slab: packed kernel params from pack_params()."""
    x2d = x.reshape(ROWS, D_IN)
    flops = 2 * (ROWS * D_IN * 3 * D_OUT          # fused QKV projection
                 + AROWS * HEAD_DIM * AROWS       # scores
                 + AROWS * AROWS * HEAD_DIM       # context
                 + ROWS * D_OUT * D_OUT           # output projection
                 + ROWS * D_OUT * D_OUT)          # feed-forward
    transcendentals = AROWS * AROWS + 2 * ROWS
    nbytes = 4 * (x2d.size + slab.size + ROWS * D_OUT)

    out2d = pl.pallas_call(
        transformer_block_kernel,
        out_shape=jax.ShapeDtypeStruct((ROWS, D_OUT), jnp.float32),
        # Single invocation (no grid): total padded VMEM footprint < 0.2 MiB.
        in_specs=[pl.BlockSpec(memory_space=pltpu.MemorySpace.VMEM),
                  pl.BlockSpec(memory_space=pltpu.MemorySpace.VMEM)],
        out_specs=pl.BlockSpec(memory_space=pltpu.MemorySpace.VMEM),
        cost_estimate=pl.CostEstimate(
            flops=flops, transcendentals=transcendentals, bytes_accessed=nbytes),
    )(x2d, slab)
    return out2d.reshape(B, T, D_OUT)


# ---- pure-JAX reference (mirrors the PyTorch forward) -------------------------
def reference(x, p):
    q = x @ p["wq"] + p["bq"]
    k = x @ p["wk"] + p["bk"]
    v = x @ p["wv"] + p["bv"]
    qh = q.reshape(B, T, NUM_HEADS, HEAD_DIM).transpose(0, 2, 1, 3)
    kh = k.reshape(B, T, NUM_HEADS, HEAD_DIM).transpose(0, 2, 1, 3)
    vh = v.reshape(B, T, NUM_HEADS, HEAD_DIM).transpose(0, 2, 1, 3)
    s = jnp.einsum("bhtd,bhsd->bhts", qh, kh) / jnp.sqrt(jnp.float32(HEAD_DIM))
    causal = jnp.tril(jnp.ones((T, T), bool))
    s = jnp.where(causal, s, -1e30)
    a = jax.nn.softmax(s, axis=-1)
    ctx = jnp.einsum("bhts,bhsd->bhtd", a, vh).transpose(0, 2, 1, 3).reshape(B, T, D_OUT)
    attn = ctx @ p["wo"] + p["bo"]

    def rms(h, g):
        return h * lax.rsqrt(jnp.mean(h * h, -1, keepdims=True) + RMS_EPS) * g

    y1 = rms(x + attn, p["g_attn"])
    return rms(y1 + y1 @ p["wff"], p["g_ffn"])


if __name__ == "__main__":
    key = jax.random.PRNGKey(0)
    keys = jax.random.split(key, 16)
    sd = 0.05
    params = {
        "wq": jax.random.normal(keys[0], (D_IN, D_OUT), jnp.float32) * sd,
        "bq": jax.random.normal(keys[1], (1, D_OUT), jnp.float32) * sd,
        "wk": jax.random.normal(keys[2], (D_IN, D_OUT), jnp.float32) * sd,
        "bk": jax.random.normal(keys[3], (1, D_OUT), jnp.float32) * sd,
        "wv": jax.random.normal(keys[4], (D_IN, D_OUT), jnp.float32) * sd,
        "bv": jax.random.normal(keys[5], (1, D_OUT), jnp.float32) * sd,
        "wo": jax.random.normal(keys[6], (D_OUT, D_OUT), jnp.float32) * sd,
        "bo": jax.random.normal(keys[7], (1, D_OUT), jnp.float32) * sd,
        "wff": jax.random.normal(keys[8], (D_OUT, D_OUT), jnp.float32) * sd,
        "g_attn": jnp.ones((1, D_OUT), jnp.float32),   # RMSNorm init = ones
        "g_ffn": jnp.ones((1, D_OUT), jnp.float32),
    }
    if not QKV_BIAS:
        for b in ("bq", "bk", "bv"):
            params[b] = jnp.zeros((1, D_OUT), jnp.float32)

    x = jax.random.normal(keys[9], (B, T, D_IN), jnp.float32)

    slab = pack_params(params)
    out = transformer_block(x, slab)
    out = jax.block_until_ready(out)

    ref = reference(x, params)
    # Softmax denominator is now an exact divide (approx EUP reciprocal removed);
    # the remaining tolerance covers f32-vs-MXU matmul accumulation differences
    # between the Pallas kernel and the XLA reference.
    np.testing.assert_allclose(np.asarray(out), np.asarray(ref), rtol=2e-4, atol=2e-4)

    print("KERNEL_OK")
</pallas_src>

<mosaic_0001>
module attributes {stable_mosaic.version = 11 : i64} {
  func.func @transformer_block_kernel(%arg0: memref<16x32xf32, #tpu.memory_space<vmem>>, %arg1: memref<65x256xf32, #tpu.memory_space<vmem>>, %arg2: memref<16x32xf32, #tpu.memory_space<vmem>>) attributes {dimension_semantics = [], scalar_prefetch = 0 : i64, scratch_operands = 0 : i64, tpu.core_type = #tpu.core_type<tc>} {
    %c0 = arith.constant 0 : index
    %c0_0 = arith.constant 0 : index
    %0 = vector.load %arg0[%c0, %c0_0] : memref<16x32xf32, #tpu.memory_space<vmem>>, vector<16x32xf32>
    %c0_1 = arith.constant 0 : index
    %c0_2 = arith.constant 0 : index
    %1 = vector.load %arg1[%c0_1, %c0_2] : memref<65x256xf32, #tpu.memory_space<vmem>>, vector<32x96xf32>
    %c64 = arith.constant 64 : index
    %c0_3 = arith.constant 0 : index
    %2 = vector.load %arg1[%c64, %c0_3] : memref<65x256xf32, #tpu.memory_space<vmem>>, vector<1x96xf32>
    %c0_4 = arith.constant 0 : index
    %c96 = arith.constant 96 : index
    %3 = vector.load %arg1[%c0_4, %c96] : memref<65x256xf32, #tpu.memory_space<vmem>>, vector<32x32xf32>
    %c64_5 = arith.constant 64 : index
    %c96_6 = arith.constant 96 : index
    %4 = vector.load %arg1[%c64_5, %c96_6] : memref<65x256xf32, #tpu.memory_space<vmem>>, vector<1x32xf32>
    %c0_7 = arith.constant 0 : index
    %c128 = arith.constant 128 : index
    %5 = vector.load %arg1[%c0_7, %c128] : memref<65x256xf32, #tpu.memory_space<vmem>>, vector<32x32xf32>
    %c64_8 = arith.constant 64 : index
    %c128_9 = arith.constant 128 : index
    %6 = vector.load %arg1[%c64_8, %c128_9] : memref<65x256xf32, #tpu.memory_space<vmem>>, vector<1x32xf32>
    %c64_10 = arith.constant 64 : index
    %c160 = arith.constant 160 : index
    %7 = vector.load %arg1[%c64_10, %c160] : memref<65x256xf32, #tpu.memory_space<vmem>>, vector<1x32xf32>
    %c0_11 = arith.constant 0 : index
    %c192 = arith.constant 192 : index
    %8 = vector.load %arg1[%c0_11, %c192] : memref<65x256xf32, #tpu.memory_space<vmem>>, vector<64x64xf32>
    %cst = arith.constant dense<0.000000e+00> : vector<16x96xf32>
    %9 = tpu.matmul %0, %1, %cst {dimension_numbers = #tpu.dot_dimension_numbers<[1], [0], [0], [1], [0, 0, 1, 1], [], []>} : vector<16x32xf32>, vector<32x96xf32>, vector<16x96xf32> -> vector<16x96xf32>
    %10 = vector.broadcast %2 : vector<1x96xf32> to vector<16x96xf32>
    %11 = arith.addf %9, %10 : vector<16x96xf32>
    %12 = vector.extract_strided_slice %11 {offsets = [0, 0], sizes = [16, 8], strides = [1, 1]} : vector<16x96xf32> to vector<16x8xf32>
    %13 = vector.extract_strided_slice %11 {offsets = [0, 8], sizes = [16, 8], strides = [1, 1]} : vector<16x96xf32> to vector<16x8xf32>
    %14 = vector.extract_strided_slice %11 {offsets = [0, 16], sizes = [16, 8], strides = [1, 1]} : vector<16x96xf32> to vector<16x8xf32>
    %15 = vector.extract_strided_slice %11 {offsets = [0, 24], sizes = [16, 8], strides = [1, 1]} : vector<16x96xf32> to vector<16x8xf32>
    %16 = tpu.concatenate %12, %13, %14, %15 in 0 : vector<16x8xf32>, vector<16x8xf32>, vector<16x8xf32>, vector<16x8xf32> -> vector<64x8xf32>
    %17 = vector.extract_strided_slice %11 {offsets = [0, 32], sizes = [16, 8], strides = [1, 1]} : vector<16x96xf32> to vector<16x8xf32>
    %18 = vector.extract_strided_slice %11 {offsets = [0, 40], sizes = [16, 8], strides = [1, 1]} : vector<16x96xf32> to vector<16x8xf32>
    %19 = vector.extract_strided_slice %11 {offsets = [0, 48], sizes = [16, 8], strides = [1, 1]} : vector<16x96xf32> to vector<16x8xf32>
    %20 = vector.extract_strided_slice %11 {offsets = [0, 56], sizes = [16, 8], strides = [1, 1]} : vector<16x96xf32> to vector<16x8xf32>
    %21 = tpu.concatenate %17, %18, %19, %20 in 0 : vector<16x8xf32>, vector<16x8xf32>, vector<16x8xf32>, vector<16x8xf32> -> vector<64x8xf32>
    %22 = vector.extract_strided_slice %11 {offsets = [0, 64], sizes = [16, 8], strides = [1, 1]} : vector<16x96xf32> to vector<16x8xf32>
    %23 = vector.extract_strided_slice %11 {offsets = [0, 72], sizes = [16, 8], strides = [1, 1]} : vector<16x96xf32> to vector<16x8xf32>
    %24 = vector.extract_strided_slice %11 {offsets = [0, 80], sizes = [16, 8], strides = [1, 1]} : vector<16x96xf32> to vector<16x8xf32>
    %25 = vector.extract_strided_slice %11 {offsets = [0, 88], sizes = [16, 8], strides = [1, 1]} : vector<16x96xf32> to vector<16x8xf32>
    %26 = tpu.concatenate %22, %23, %24, %25 in 0 : vector<16x8xf32>, vector<16x8xf32>, vector<16x8xf32>, vector<16x8xf32> -> vector<64x8xf32>
    %cst_12 = arith.constant dense<0.000000e+00> : vector<64x64xf32>
    %27 = tpu.matmul %16, %21, %cst_12 {dimension_numbers = #tpu.dot_dimension_numbers<[1], [1], [0], [0], [0, 0, 1, 0], [], []>} : vector<64x8xf32>, vector<64x8xf32>, vector<64x64xf32> -> vector<64x64xf32>
    %28 = arith.addf %27, %8 : vector<64x64xf32>
    %cst_13 = arith.constant dense<0xFF800000> : vector<64xf32>
    %29 = vector.multi_reduction <maximumf>, %28, %cst_13 [1] : vector<64x64xf32> to vector<64xf32>
    %30 = vector.shape_cast %29 : vector<64xf32> to vector<64x1xf32>
    %31 = vector.broadcast %30 : vector<64x1xf32> to vector<64x64xf32>
    %32 = arith.subf %28, %31 : vector<64x64xf32>
    %33 = math.exp %32 : vector<64x64xf32>
    %cst_14 = arith.constant dense<0.000000e+00> : vector<64xf32>
    %34 = vector.multi_reduction <add>, %33, %cst_14 [1] : vector<64x64xf32> to vector<64xf32>
    %35 = vector.shape_cast %34 : vector<64xf32> to vector<64x1xf32>
    %36 = vector.broadcast %35 : vector<64x1xf32> to vector<64x64xf32>
    %37 = arith.divf %33, %36 : vector<64x64xf32>
    %cst_15 = arith.constant dense<0.000000e+00> : vector<64x8xf32>
    %38 = tpu.matmul %37, %26, %cst_15 {dimension_numbers = #tpu.dot_dimension_numbers<[1], [0], [0], [1], [0, 0, 1, 1], [], []>} : vector<64x64xf32>, vector<64x8xf32>, vector<64x8xf32> -> vector<64x8xf32>
    %39 = vector.extract_strided_slice %38 {offsets = [0, 0], sizes = [16, 8], strides = [1, 1]} : vector<64x8xf32> to vector<16x8xf32>
    %40 = vector.extract_strided_slice %38 {offsets = [16, 0], sizes = [16, 8], strides = [1, 1]} : vector<64x8xf32> to vector<16x8xf32>
    %41 = vector.extract_strided_slice %38 {offsets = [32, 0], sizes = [16, 8], strides = [1, 1]} : vector<64x8xf32> to vector<16x8xf32>
    %42 = vector.extract_strided_slice %38 {offsets = [48, 0], sizes = [16, 8], strides = [1, 1]} : vector<64x8xf32> to vector<16x8xf32>
    %43 = tpu.concatenate %39, %40, %41, %42 in 1 : vector<16x8xf32>, vector<16x8xf32>, vector<16x8xf32>, vector<16x8xf32> -> vector<16x32xf32>
    %cst_16 = arith.constant dense<0.000000e+00> : vector<16x32xf32>
    %44 = tpu.matmul %43, %3, %cst_16 {dimension_numbers = #tpu.dot_dimension_numbers<[1], [0], [0], [1], [0, 0, 1, 1], [], []>} : vector<16x32xf32>, vector<32x32xf32>, vector<16x32xf32> -> vector<16x32xf32>
    %45 = vector.broadcast %4 : vector<1x32xf32> to vector<16x32xf32>
    %46 = arith.addf %44, %45 : vector<16x32xf32>
    %47 = arith.addf %0, %46 : vector<16x32xf32>
    %48 = arith.mulf %47, %47 : vector<16x32xf32>
    %cst_17 = arith.constant dense<0.000000e+00> : vector<16xf32>
    %49 = vector.multi_reduction <add>, %48, %cst_17 [1] : vector<16x32xf32> to vector<16xf32>
    %50 = vector.shape_cast %49 : vector<16xf32> to vector<16x1xf32>
    %cst_18 = arith.constant 3.200000e+01 : f32
    %51 = vector.broadcast %cst_18 : f32 to vector<16x1xf32>
    %52 = arith.divf %50, %51 : vector<16x1xf32>
    %cst_19 = arith.constant 9.99999974E-6 : f32
    %53 = vector.broadcast %cst_19 : f32 to vector<16x1xf32>
    %54 = arith.addf %52, %53 : vector<16x1xf32>
    %55 = math.rsqrt %54 : vector<16x1xf32>
    %56 = vector.broadcast %55 : vector<16x1xf32> to vector<16x32xf32>
    %57 = arith.mulf %47, %56 : vector<16x32xf32>
    %58 = vector.broadcast %6 : vector<1x32xf32> to vector<16x32xf32>
    %59 = arith.mulf %57, %58 : vector<16x32xf32>
    %cst_20 = arith.constant dense<0.000000e+00> : vector<16x32xf32>
    %60 = tpu.matmul %59, %5, %cst_20 {dimension_numbers = #tpu.dot_dimension_numbers<[1], [0], [0], [1], [0, 0, 1, 1], [], []>} : vector<16x32xf32>, vector<32x32xf32>, vector<16x32xf32> -> vector<16x32xf32>
    %61 = arith.addf %59, %60 : vector<16x32xf32>
    %62 = arith.mulf %61, %61 : vector<16x32xf32>
    %cst_21 = arith.constant dense<0.000000e+00> : vector<16xf32>
    %63 = vector.multi_reduction <add>, %62, %cst_21 [1] : vector<16x32xf32> to vector<16xf32>
    %64 = vector.shape_cast %63 : vector<16xf32> to vector<16x1xf32>
    %cst_22 = arith.constant 3.200000e+01 : f32
    %65 = vector.broadcast %cst_22 : f32 to vector<16x1xf32>
    %66 = arith.divf %64, %65 : vector<16x1xf32>
    %cst_23 = arith.constant 9.99999974E-6 : f32
    %67 = vector.broadcast %cst_23 : f32 to vector<16x1xf32>
    %68 = arith.addf %66, %67 : vector<16x1xf32>
    %69 = math.rsqrt %68 : vector<16x1xf32>
    %70 = vector.broadcast %69 : vector<16x1xf32> to vector<16x32xf32>
    %71 = arith.mulf %61, %70 : vector<16x32xf32>
    %72 = vector.broadcast %7 : vector<1x32xf32> to vector<16x32xf32>
    %73 = arith.mulf %71, %72 : vector<16x32xf32>
    %c0_24 = arith.constant 0 : index
    %c0_25 = arith.constant 0 : index
    %74 = vector.load %arg2[%c0_24, %c0_25] : memref<16x32xf32, #tpu.memory_space<vmem>>, vector<16x32xf32>
    tpu.vector_store %arg2[%c0_24, %c0_25], %73 {strides = array<i32>} : memref<16x32xf32, #tpu.memory_space<vmem>>, vector<16x32xf32>,
    return
  }
}

</mosaic_0001>

<llo_original>
// kernel: tpu_custom_call.1
$region0: #{tpu_custom_call.1}
  #allocation0 [shape = 'u32[]', space=smem, size = 0x4, offset = 0x4, fixed_abs, tag = 'smem constant byte address 0x4 - core index']
  #allocation1 [shape = 'u32[144,128]{1,0:T(1,128)}', space=vmem, size = 0x12000, scoped, tag = 'internal scratch']
  %s0 = inlined_call_operand.hbm [shape: f32[16,32], index: 0, kind: input, shape index: {}]
  %s1 = inlined_call_operand.hbm [shape: f32[65,256], index: 1, kind: input, shape index: {}]
  %s2 = inlined_call_operand.hbm [shape: f32[16,32], index: 2, kind: output, shape index: {}]
  %s3 = sld [smem:[#allocation0]]
  $region26: #{tpu_custom_call.1} parent=0
    _
  %s5 = ssub.s32 1, %s3
  %s6 = scalar_select 0, %s5, %s3
  $region1: #{tpu_custom_call.1} parent=0
    #allocation2 [shape = 'u8[8192]{0}', space=vmem, size = 0x2000, scoped, tag = 'input window, operand 0, single buffered']
    #allocation3 [shape = 's32[1]{0}', space=sflag, size = 0x4, scoped, tag = 'scoped memory for tpu_custom_call.1']
    #allocation4 [shape = 's32[1]{0}', space=sflag, size = 0x4, scoped, tag = 'scoped memory for tpu_custom_call.1']
    #allocation5 [shape = 'u8[73728]{0}', space=vmem, size = 0x12000, scoped, tag = 'input window, operand 1, single buffered']
    #allocation6 [shape = 's32[1]{0}', space=sflag, size = 0x4, scoped, tag = 'scoped memory for tpu_custom_call.1']
    #allocation7 [shape = 'u8[8192]{0}', space=vmem, size = 0x2000, scoped, tag = 'output window, operand 0, single buffered']
    %7 = vsyncpa [#allocation3], 0
    %8 = vsyncpa [#allocation6], 0
    %9 = vsyncpa [#allocation4], 0
    // Predicated region
    $region2: #{tpu_custom_call.1} parent=1 // pred_check
      _
    $region3: #{tpu_custom_call.1} parent=1 // pred_check_branch
      %11 = sbr.rel (0) target = $region5
    $region4: #{tpu_custom_call.1} parent=1 // pred_region
      %s13 = ssub.s32 256, 256
      %14 = vsyncadd [#allocation3], %s13
      %s15 = sshll.u32 [#allocation2], 4
      %s16 = int_to_ptr.vmem [resolvable:$true] %s15
      %21 = dma.hbm_to_vmem [thread:$0]  %s0, 256, %s16, [#allocation3], 128, 128, 8
    $region5: #{tpu_custom_call.1} parent=1 // pred_fallthru
      _
    // Predicated region
    $region6: #{tpu_custom_call.1} parent=1 // pred_check
      _
    $region7: #{tpu_custom_call.1} parent=1 // pred_check_branch
      %23 = sbr.rel (0) target = $region9
    $region8: #{tpu_custom_call.1} parent=1 // pred_region
      %s25 = ssub.s32 2304, 2304
      %26 = vsyncadd [#allocation6], %s25
      %s27 = sshll.u32 [#allocation5], 4
      %s28 = int_to_ptr.vmem [resolvable:$true] %s27
      %33 = dma.hbm_to_vmem [thread:$0]  %s1, 2304, %s28, [#allocation6], 256, 256, 16
    $region9: #{tpu_custom_call.1} parent=1 // pred_fallthru
      _
    // Predicated region
    $region10: #{tpu_custom_call.1} parent=1 // pred_check
      _
    $region11: #{tpu_custom_call.1} parent=1 // pred_check_branch
      %35 = sbr.rel (0) target = $region13
    $region12: #{tpu_custom_call.1} parent=1 // pred_region
      %36 = dma.done [#allocation3], 256
    $region13: #{tpu_custom_call.1} parent=1 // pred_fallthru
      _
    // Predicated region
    $region14: #{tpu_custom_call.1} parent=1 // pred_check
      _
    $region15: #{tpu_custom_call.1} parent=1 // pred_check_branch
      %38 = sbr.rel (0) target = $region17
    $region16: #{tpu_custom_call.1} parent=1 // pred_region
      %39 = dma.done [#allocation6], 2304
    $region17: #{tpu_custom_call.1} parent=1 // pred_fallthru
      _
    %v40 = vld [vmem:[#allocation2] sm:$0xff]
    %v41 = vld [vmem:[#allocation2 + $0x8] sm:$0xff]
    %v42 = vld [vmem:[#allocation5] sm:$0xff]
    %v43 = vld [vmem:[#allocation5 + $0x10] sm:$0xff]
    %v44 = vld [vmem:[#allocation5 + $0x20] sm:$0xff]
    %v45 = vld [vmem:[#allocation5 + $0x30] sm:$0xff]
    %v46 = vld [vmem:[#allocation5 + $0x80] ss:$0 sm:$0xff]
    %v47 = vld [vmem:[#allocation5 + $0x8] sm:$0xff]
    %v48 = vld [vmem:[#allocation5 + $0x18] sm:$0xff]
    %v49 = vld [vmem:[#allocation5 + $0x28] sm:$0xff]
    %v50 = vld [vmem:[#allocation5 + $0x38] sm:$0xff]
    %v51 = vld [vmem:[#allocation5 + $0x88] ss:$0 sm:$0xff]
    %v52 = vld [vmem:[#allocation5 + $0x48] sm:$0xff]
    %v53 = vld [vmem:[#allocation5 + $0x58] sm:$0xff]
    %v54 = vld [vmem:[#allocation5 + $0x68] sm:$0xff]
    %v55 = vld [vmem:[#allocation5 + $0x78] sm:$0xff]
    %vm56 = vcmask 261120
    %v58 = vsel %vm56, %v40, 0
    %v61 = vsel %vm56, %v41, 0
    %63 = vmatprep.subr.mxu0 0.0
    %64 = vmatpush1.msra.mxu0 %v42
    %65 = vmatprep.subr.mxu0 0.0
    %66 = vmatpush1.msra.mxu0 %v43
    %67 = vmatprep.subr.mxu0 0.0
    %68 = vmatpush1.msra.mxu0 %v44
    %69 = vmatprep.subr.mxu0 0.0
    %70 = vmatpush1.msra.mxu0 %v45
    %71 = vmatprep.subr.mxu0 0.0
    %72 = vmatpush1.msra.mxu0 0.0
    %73 = vmatprep.subr.mxu0 0.0
    %74 = vmatpush1.msra.mxu0 0.0
    %75 = vmatprep.subr.mxu0 0.0
    %76 = vmatpush1.msra.mxu0 0.0
    %77 = vmatprep.subr.mxu0 0.0
    %78 = vmatpush1.msra.mxu0 0.0
    %79 = vmatprep.subr.mxu0 0.0
    %80 = vmatpush1.msra.mxu0 0.0
    %81 = vmatprep.subr.mxu0 0.0
    %82 = vmatpush1.msra.mxu0 0.0
    %83 = vmatprep.subr.mxu0 0.0
    %84 = vmatpush1.msra.mxu0 0.0
    %85 = vmatprep.subr.mxu0 0.0
    %86 = vmatpush1.msra.mxu0 0.0
    %87 = vmatprep.subr.mxu0 0.0
    %88 = vmatpush1.msra.mxu0 0.0
    %89 = vmatprep.subr.mxu0 0.0
    %90 = vmatpush1.msra.mxu0 0.0
    %91 = vmatprep.subr.mxu0 0.0
    %92 = vmatpush1.msra.mxu0 0.0
    %93 = vmatprep.subr.mxu0 0.0
    %94 = vmatpush1.msra.mxu0 0.0
    %95 = vmatprep.subr.mxu0 0.0
    %96 = vmatpush1.msra.mxu0 0.0
    %97 = vmatprep.subr.mxu0 0.0
    %98 = vmatpush1.msra.mxu0 0.0
    %99 = vmatprep.subr.mxu0 0.0
    %100 = vmatpush1.msra.mxu0 0.0
    %101 = vmatprep.subr.mxu0 0.0
    %102 = vmatpush1.msra.mxu0 0.0
    %103 = vmatprep.subr.mxu0 0.0
    %104 = vmatpush1.msra.mxu0 0.0
    %105 = vmatprep.subr.mxu0 0.0
    %106 = vmatpush1.msra.mxu0 0.0
    %107 = vmatprep.subr.mxu0 0.0
    %108 = vmatpush1.msra.mxu0 0.0
    %109 = vmatprep.subr.mxu0 0.0
    %110 = vmatpush1.msra.mxu0 0.0
    %111 = vmatprep.subr.mxu0 0.0
    %112 = vmatpush1.msra.mxu0 0.0
    %113 = vmatprep.subr.mxu0 0.0
    %114 = vmatpush1.msra.mxu0 0.0
    %115 = vmatprep.subr.mxu0 0.0
    %116 = vmatpush1.msra.mxu0 0.0
    %117 = vmatprep.subr.mxu0 0.0
    %118 = vmatpush1.msra.mxu0 0.0
    %119 = vmatprep.subr.mxu0 0.0
    %120 = vmatpush1.msra.mxu0 0.0
    %121 = vmatprep.subr.mxu0 0.0
    %122 = vmatpush1.msra.mxu0 0.0
    %123 = vmatprep.subr.mxu0 0.0
    %124 = vmatpush1.msra.mxu0 0.0
    %125 = vmatprep.subr.mxu0 0.0
    %126 = vmatpush1.msra.mxu0 0.0
    %127 = vmatprep.mubr.f32.mxu0 0.0
    %128 = vmatmul.mubr.f32.gmra.mrb[0].mxu0 %v58
    %v129 = vpop.f32.mrb[0].mxu0
    %v130 = vadd.f32 %v46, %v129
    %v131 = vpop.f32.mrb[0].mxu0
    %132 = vmatprep.mubr.f32.mxu0 0.0
    %133 = vmatmul.mubr.f32.gmra.mrb[0].mxu0 %v61
    %v134 = vpop.f32.mrb[0].mxu0
    %v135 = vadd.f32 %v46, %v134
    %v136 = vpop.f32.mrb[0].mxu0
    %137 = vdwg.mxu0
    %140 = vrot.lane.b32.xlu0 %v130, 120
    %v141 = vpop.permute.xlu0 %140
    %142 = vrot.lane.b32.xlu0 %v135, 120
    %v143 = vpop.permute.xlu0 %142
    %144 = vrot.lane.b32.xlu0 %v130, 112
    %v145 = vpop.permute.xlu0 %144
    %146 = vrot.lane.b32.xlu0 %v135, 112
    %v147 = vpop.permute.xlu0 %146
    %148 = vrot.lane.b32.xlu0 %v130, 104
    %v149 = vpop.permute.xlu0 %148
    %150 = vrot.lane.b32.xlu0 %v135, 104
    %v151 = vpop.permute.xlu0 %150
    %152 = vrot.lane.b32.xlu0 %v130, 96
    %v153 = vpop.permute.xlu0 %152
    %154 = vrot.lane.b32.xlu0 %v135, 96
    %v155 = vpop.permute.xlu0 %154
    %156 = vrot.lane.b32.xlu0 %v141, 96
    %v157 = vpop.permute.xlu0 %156
    %158 = vrot.lane.b32.xlu0 %v143, 96
    %v159 = vpop.permute.xlu0 %158
    %160 = vrot.lane.b32.xlu0 %v145, 96
    %v161 = vpop.permute.xlu0 %160
    %162 = vrot.lane.b32.xlu0 %v147, 96
    %v163 = vpop.permute.xlu0 %162
    %164 = vrot.lane.b32.xlu0 %v149, 96
    %v165 = vpop.permute.xlu0 %164
    %166 = vrot.lane.b32.xlu0 %v151, 96
    %v167 = vpop.permute.xlu0 %166
    %176 = vrot.lane.b32.xlu0 %v47, 64
    %v177 = vpop.permute.xlu0 %176
    %178 = vrot.lane.b32.xlu0 %v48, 64
    %v179 = vpop.permute.xlu0 %178
    %180 = vrot.lane.b32.xlu0 %v49, 64
    %v181 = vpop.permute.xlu0 %180
    %182 = vrot.lane.b32.xlu0 %v50, 64
    %v183 = vpop.permute.xlu0 %182
    %184 = vrot.lane.b32.xlu0 %v52, 64
    %v185 = vpop.permute.xlu0 %184
    %186 = vrot.lane.b32.xlu0 %v53, 64
    %v187 = vpop.permute.xlu0 %186
    %188 = vrot.lane.b32.xlu0 %v54, 64
    %v189 = vpop.permute.xlu0 %188
    %190 = vrot.lane.b32.xlu0 %v55, 64
    %v191 = vpop.permute.xlu0 %190
    %vm200 = vcmask 64512
    %v201 = vsel %vm200, %v130, 0
    %v203 = vsel %vm200, %v135, 0
    %v205 = vsel %vm200, %v141, 0
    %v207 = vsel %vm200, %v143, 0
    %v209 = vsel %vm200, %v145, 0
    %v211 = vsel %vm200, %v147, 0
    %v213 = vsel %vm200, %v149, 0
    %v215 = vsel %vm200, %v151, 0
    %v217 = vsel %vm200, %v153, 0
    %v219 = vsel %vm200, %v155, 0
    %v221 = vsel %vm200, %v157, 0
    %v223 = vsel %vm200, %v159, 0
    %v225 = vsel %vm200, %v161, 0
    %v227 = vsel %vm200, %v163, 0
    %v229 = vsel %vm200, %v165, 0
    %v231 = vsel %vm200, %v167, 0
    %233 = vmatprep.subr.mxu0 0.0
    %234 = vmatpush1.xpose.msra.mxu0 %v217
    %235 = vmatprep.subr.mxu0 0.0
    %236 = vmatpush1.xpose.msra.mxu0 %v219
    %237 = vmatprep.subr.mxu0 0.0
    %238 = vmatpush1.xpose.msra.mxu0 %v221
    %239 = vmatprep.subr.mxu0 0.0
    %240 = vmatpush1.xpose.msra.mxu0 %v223
    %241 = vmatprep.subr.mxu0 0.0
    %242 = vmatpush1.xpose.msra.mxu0 %v225
    %243 = vmatprep.subr.mxu0 0.0
    %244 = vmatpush1.xpose.msra.mxu0 %v227
    %245 = vmatprep.subr.mxu0 0.0
    %246 = vmatpush1.xpose.msra.mxu0 %v229
    %247 = vmatprep.subr.mxu0 0.0
    %248 = vmatpush1.xpose.msra.mxu0 %v231
    %249 = vmatprep.subr.mxu0 0.0
    %250 = vmatpush1.xpose.msra.mxu0 0.0
    %251 = vmatprep.subr.mxu0 0.0
    %252 = vmatpush1.xpose.msra.mxu0 0.0
    %253 = vmatprep.subr.mxu0 0.0
    %254 = vmatpush1.xpose.msra.mxu0 0.0
    %255 = vmatprep.subr.mxu0 0.0
    %256 = vmatpush1.xpose.msra.mxu0 0.0
    %257 = vmatprep.subr.mxu0 0.0
    %258 = vmatpush1.xpose.msra.mxu0 0.0
    %259 = vmatprep.subr.mxu0 0.0
    %260 = vmatpush1.xpose.msra.mxu0 0.0
    %261 = vmatprep.subr.mxu0 0.0
    %262 = vmatpush1.xpose.msra.mxu0 0.0
    %263 = vmatprep.subr.mxu0 0.0
    %264 = vmatpush1.xpose.msra.mxu0 0.0
    %265 = vmatprep.subr.mxu0 0.0
    %266 = vmatpush1.xpose.msra.mxu0 0.0
    %267 = vmatprep.subr.mxu0 0.0
    %268 = vmatpush1.xpose.msra.mxu0 0.0
    %269 = vmatprep.subr.mxu0 0.0
    %270 = vmatpush1.xpose.msra.mxu0 0.0
    %271 = vmatprep.subr.mxu0 0.0
    %272 = vmatpush1.xpose.msra.mxu0 0.0
    %273 = vmatprep.subr.mxu0 0.0
    %274 = vmatpush1.xpose.msra.mxu0 0.0
    %275 = vmatprep.subr.mxu0 0.0
    %276 = vmatpush1.xpose.msra.mxu0 0.0
    %277 = vmatprep.subr.mxu0 0.0
    %278 = vmatpush1.xpose.msra.mxu0 0.0
    %279 = vmatprep.subr.mxu0 0.0
    %280 = vmatpush1.xpose.msra.mxu0 0.0
    %281 = vmatprep.subr.mxu0 0.0
    %282 = vmatpush1.xpose.msra.mxu0 0.0
    %283 = vmatprep.subr.mxu0 0.0
    %284 = vmatpush1.xpose.msra.mxu0 0.0
    %285 = vmatprep.subr.mxu0 0.0
    %286 = vmatpush1.xpose.msra.mxu0 0.0
    %287 = vmatprep.subr.mxu0 0.0
    %288 = vmatpush1.xpose.msra.mxu0 0.0
    %289 = vmatprep.subr.mxu0 0.0
    %290 = vmatpush1.xpose.msra.mxu0 0.0
    %291 = vmatprep.subr.mxu0 0.0
    %292 = vmatpush1.xpose.msra.mxu0 0.0
    %293 = vmatprep.subr.mxu0 0.0
    %294 = vmatpush1.xpose.msra.mxu0 0.0
    %295 = vmatprep.subr.mxu0 0.0
    %296 = vmatpush1.xpose.msra.mxu0 0.0
    %297 = vmatprep.mubr.f32.mxu0 0.0
    %298 = vmatmul.mubr.f32.gmra.mrb[0].mxu0 %v201
    %v299 = vpop.f32.mrb[0].mxu0
    %v300 = vadd.f32 %v177, %v299
    %v301 = vpop.f32.mrb[0].mxu0
    %302 = vmatprep.mubr.f32.mxu0 0.0
    %303 = vmatmul.mubr.f32.gmra.mrb[0].mxu0 %v203
    %v304 = vpop.f32.mrb[0].mxu0
    %v305 = vadd.f32 %v179, %v304
    %v306 = vpop.f32.mrb[0].mxu0
    %307 = vmatprep.mubr.f32.mxu0 0.0
    %308 = vmatmul.mubr.f32.gmra.mrb[0].mxu0 %v205
    %v309 = vpop.f32.mrb[0].mxu0
    %v310 = vadd.f32 %v181, %v309
    %v311 = vpop.f32.mrb[0].mxu0
    %312 = vmatprep.mubr.f32.mxu0 0.0
    %313 = vmatmul.mubr.f32.gmra.mrb[0].mxu0 %v207
    %v314 = vpop.f32.mrb[0].mxu0
    %v315 = vadd.f32 %v183, %v314
    %v316 = vpop.f32.mrb[0].mxu0
    %317 = vmatprep.mubr.f32.mxu0 0.0
    %318 = vmatmul.mubr.f32.gmra.mrb[0].mxu0 %v209
    %v319 = vpop.f32.mrb[0].mxu0
    %v320 = vadd.f32 %v185, %v319
    %v321 = vpop.f32.mrb[0].mxu0
    %322 = vmatprep.mubr.f32.mxu0 0.0
    %323 = vmatmul.mubr.f32.gmra.mrb[0].mxu0 %v211
    %v324 = vpop.f32.mrb[0].mxu0
    %v325 = vadd.f32 %v187, %v324
    %v326 = vpop.f32.mrb[0].mxu0
    %327 = vmatprep.mubr.f32.mxu0 0.0
    %328 = vmatmul.mubr.f32.gmra.mrb[0].mxu0 %v213
    %v329 = vpop.f32.mrb[0].mxu0
    %v330 = vadd.f32 %v189, %v329
    %v331 = vpop.f32.mrb[0].mxu0
    %332 = vmatprep.mubr.f32.mxu0 0.0
    %333 = vmatmul.mubr.f32.gmra.mrb[0].mxu0 %v215
    %v334 = vpop.f32.mrb[0].mxu0
    %v335 = vadd.f32 %v191, %v334
    %v336 = vpop.f32.mrb[0].mxu0
    %337 = vdwg.mxu0
    %vm338 = vcmask 523264
    %v339 = vsel %vm338, %v300, -inf
    %340 = vmax.xlane.f32.xlu0 %v339
    %v341 = vpop.xlane.xlu0 %340
    %v342 = vsel %vm338, %v305, -inf
    %343 = vmax.xlane.f32.xlu0 %v342
    %v344 = vpop.xlane.xlu0 %343
    %v345 = vsel %vm338, %v310, -inf
    %346 = vmax.xlane.f32.xlu0 %v345
    %v347 = vpop.xlane.xlu0 %346
    %v348 = vsel %vm338, %v315, -inf
    %349 = vmax.xlane.f32.xlu0 %v348
    %v350 = vpop.xlane.xlu0 %349
    %v351 = vsel %vm338, %v320, -inf
    %352 = vmax.xlane.f32.xlu0 %v351
    %v353 = vpop.xlane.xlu0 %352
    %v354 = vsel %vm338, %v325, -inf
    %355 = vmax.xlane.f32.xlu0 %v354
    %v356 = vpop.xlane.xlu0 %355
    %v357 = vsel %vm338, %v330, -inf
    %358 = vmax.xlane.f32.xlu0 %v357
    %v359 = vpop.xlane.xlu0 %358
    %v360 = vsel %vm338, %v335, -inf
    %361 = vmax.xlane.f32.xlu0 %v360
    %v362 = vpop.xlane.xlu0 %361
    %v363 = vsub.f32 %v300, %v341
    %v364 = vsub.f32 %v305, %v344
    %v365 = vsub.f32 %v310, %v347
    %v366 = vsub.f32 %v315, %v350
    %v367 = vsub.f32 %v320, %v353
    %v368 = vsub.f32 %v325, %v356
    %v369 = vsub.f32 %v330, %v359
    %v370 = vsub.f32 %v335, %v362
    %v371 = vmul.f32 %v363, 1.442695
    %v372 = vpow.pop %v371
    %v373 = vmul.f32 %v364, 1.442695
    %v374 = vpow.pop %v373
    %v375 = vmul.f32 %v365, 1.442695
    %v376 = vpow.pop %v375
    %v377 = vmul.f32 %v366, 1.442695
    %v378 = vpow.pop %v377
    %v379 = vmul.f32 %v367, 1.442695
    %v380 = vpow.pop %v379
    %v381 = vmul.f32 %v368, 1.442695
    %v382 = vpow.pop %v381
    %v383 = vmul.f32 %v369, 1.442695
    %v384 = vpow.pop %v383
    %v385 = vmul.f32 %v370, 1.442695
    %v386 = vpow.pop %v385
    %v387 = vsel %vm338, %v372, 0.0
    %388 = vadd.xlane.f32.xlu0 %v387
    %v389 = vpop.xlane.xlu0 %388
    %v390 = vsel %vm338, %v374, 0.0
    %391 = vadd.xlane.f32.xlu0 %v390
    %v392 = vpop.xlane.xlu0 %391
    %v393 = vsel %vm338, %v376, 0.0
    %394 = vadd.xlane.f32.xlu0 %v393
    %v395 = vpop.xlane.xlu0 %394
    %v396 = vsel %vm338, %v378, 0.0
    %397 = vadd.xlane.f32.xlu0 %v396
    %v398 = vpop.xlane.xlu0 %397
    %v399 = vsel %vm338, %v380, 0.0
    %400 = vadd.xlane.f32.xlu0 %v399
    %v401 = vpop.xlane.xlu0 %400
    %v402 = vsel %vm338, %v382, 0.0
    %403 = vadd.xlane.f32.xlu0 %v402
    %v404 = vpop.xlane.xlu0 %403
    %v405 = vsel %vm338, %v384, 0.0
    %406 = vadd.xlane.f32.xlu0 %v405
    %v407 = vpop.xlane.xlu0 %406
    %v408 = vsel %vm338, %v386, 0.0
    %409 = vadd.xlane.f32.xlu0 %v408
    %v410 = vpop.xlane.xlu0 %409
    %v411 = vrcp.pop %v389
    %v412 = vmul.f32 %v372, %v411
    %v413 = vrcp.pop %v392
    %v414 = vmul.f32 %v374, %v413
    %v415 = vrcp.pop %v395
    %v416 = vmul.f32 %v376, %v415
    %v417 = vrcp.pop %v398
    %v418 = vmul.f32 %v378, %v417
    %v419 = vrcp.pop %v401
    %v420 = vmul.f32 %v380, %v419
    %v421 = vrcp.pop %v404
    %v422 = vmul.f32 %v382, %v421
    %v423 = vrcp.pop %v407
    %v424 = vmul.f32 %v384, %v423
    %v425 = vrcp.pop %v410
    %v426 = vmul.f32 %v386, %v425
    %427 = vrot.lane.b32.xlu0 %v130, 64
    %v428 = vpop.permute.xlu0 %427
    %429 = vrot.lane.b32.xlu0 %v135, 64
    %v430 = vpop.permute.xlu0 %429
    %431 = vrot.lane.b32.xlu0 %v141, 64
    %v432 = vpop.permute.xlu0 %431
    %433 = vrot.lane.b32.xlu0 %v143, 64
    %v434 = vpop.permute.xlu0 %433
    %435 = vrot.lane.b32.xlu0 %v145, 64
    %v436 = vpop.permute.xlu0 %435
    %437 = vrot.lane.b32.xlu0 %v147, 64
    %v438 = vpop.permute.xlu0 %437
    %439 = vrot.lane.b32.xlu0 %v149, 64
    %v440 = vpop.permute.xlu0 %439
    %441 = vrot.lane.b32.xlu0 %v151, 64
    %v442 = vpop.permute.xlu0 %441
    %v452 = vsel %vm338, %v412, 0
    %v455 = vsel %vm338, %v414, 0
    %v458 = vsel %vm338, %v416, 0
    %v461 = vsel %vm338, %v418, 0
    %v464 = vsel %vm338, %v420, 0
    %v467 = vsel %vm338, %v422, 0
    %v470 = vsel %vm338, %v424, 0
    %v473 = vsel %vm338, %v426, 0
    %475 = vmatprep.subr.mxu0 0.0
    %476 = vmatpush1.msra.mxu0 %v428
    %477 = vmatprep.subr.mxu0 0.0
    %478 = vmatpush1.msra.mxu0 %v430
    %479 = vmatprep.subr.mxu0 0.0
    %480 = vmatpush1.msra.mxu0 %v432
    %481 = vmatprep.subr.mxu0 0.0
    %482 = vmatpush1.msra.mxu0 %v434
    %483 = vmatprep.subr.mxu0 0.0
    %484 = vmatpush1.msra.mxu0 %v436
    %485 = vmatprep.subr.mxu0 0.0
    %486 = vmatpush1.msra.mxu0 %v438
    %487 = vmatprep.subr.mxu0 0.0
    %488 = vmatpush1.msra.mxu0 %v440
    %489 = vmatprep.subr.mxu0 0.0
    %490 = vmatpush1.msra.mxu0 %v442
    %491 = vmatprep.subr.mxu0 0.0
    %492 = vmatpush1.msra.mxu0 0.0
    %493 = vmatprep.subr.mxu0 0.0
    %494 = vmatpush1.msra.mxu0 0.0
    %495 = vmatprep.subr.mxu0 0.0
    %496 = vmatpush1.msra.mxu0 0.0
    %497 = vmatprep.subr.mxu0 0.0
    %498 = vmatpush1.msra.mxu0 0.0
    %499 = vmatprep.subr.mxu0 0.0
    %500 = vmatpush1.msra.mxu0 0.0
    %501 = vmatprep.subr.mxu0 0.0
    %502 = vmatpush1.msra.mxu0 0.0
    %503 = vmatprep.subr.mxu0 0.0
    %504 = vmatpush1.msra.mxu0 0.0
    %505 = vmatprep.subr.mxu0 0.0
    %506 = vmatpush1.msra.mxu0 0.0
    %507 = vmatprep.subr.mxu0 0.0
    %508 = vmatpush1.msra.mxu0 0.0
    %509 = vmatprep.subr.mxu0 0.0
    %510 = vmatpush1.msra.mxu0 0.0
    %511 = vmatprep.subr.mxu0 0.0
    %512 = vmatpush1.msra.mxu0 0.0
    %513 = vmatprep.subr.mxu0 0.0
    %514 = vmatpush1.msra.mxu0 0.0
    %515 = vmatprep.subr.mxu0 0.0
    %516 = vmatpush1.msra.mxu0 0.0
    %517 = vmatprep.subr.mxu0 0.0
    %518 = vmatpush1.msra.mxu0 0.0
    %519 = vmatprep.subr.mxu0 0.0
    %520 = vmatpush1.msra.mxu0 0.0
    %521 = vmatprep.subr.mxu0 0.0
    %522 = vmatpush1.msra.mxu0 0.0
    %523 = vmatprep.subr.mxu0 0.0
    %524 = vmatpush1.msra.mxu0 0.0
    %525 = vmatprep.subr.mxu0 0.0
    %526 = vmatpush1.msra.mxu0 0.0
    %527 = vmatprep.subr.mxu0 0.0
    %528 = vmatpush1.msra.mxu0 0.0
    %529 = vmatprep.subr.mxu0 0.0
    %530 = vmatpush1.msra.mxu0 0.0
    %531 = vmatprep.subr.mxu0 0.0
    %532 = vmatpush1.msra.mxu0 0.0
    %533 = vmatprep.subr.mxu0 0.0
    %534 = vmatpush1.msra.mxu0 0.0
    %535 = vmatprep.subr.mxu0 0.0
    %536 = vmatpush1.msra.mxu0 0.0
    %537 = vmatprep.subr.mxu0 0.0
    %538 = vmatpush1.msra.mxu0 0.0
    %539 = vmatprep.mubr.f32.mxu0 0.0
    %540 = vmatmul.mubr.f32.gmra.mrb[0].mxu0 %v452
    %v541 = vpop.f32.mrb[0].mxu0
    %v542 = vadd.f32 0.0, %v541
    %v543 = vpop.f32.mrb[0].mxu0
    %544 = vmatprep.mubr.f32.mxu0 0.0
    %545 = vmatmul.mubr.f32.gmra.mrb[0].mxu0 %v455
    %v546 = vpop.f32.mrb[0].mxu0
    %v547 = vadd.f32 0.0, %v546
    %v548 = vpop.f32.mrb[0].mxu0
    %549 = vmatprep.mubr.f32.mxu0 0.0
    %550 = vmatmul.mubr.f32.gmra.mrb[0].mxu0 %v458
    %v551 = vpop.f32.mrb[0].mxu0
    %v552 = vadd.f32 0.0, %v551
    %v553 = vpop.f32.mrb[0].mxu0
    %554 = vmatprep.mubr.f32.mxu0 0.0
    %555 = vmatmul.mubr.f32.gmra.mrb[0].mxu0 %v461
    %v556 = vpop.f32.mrb[0].mxu0
    %v557 = vadd.f32 0.0, %v556
    %v558 = vpop.f32.mrb[0].mxu0
    %559 = vmatprep.mubr.f32.mxu0 0.0
    %560 = vmatmul.mubr.f32.gmra.mrb[0].mxu0 %v464
    %v561 = vpop.f32.mrb[0].mxu0
    %v562 = vadd.f32 0.0, %v561
    %v563 = vpop.f32.mrb[0].mxu0
    %564 = vmatprep.mubr.f32.mxu0 0.0
    %565 = vmatmul.mubr.f32.gmra.mrb[0].mxu0 %v467
    %v566 = vpop.f32.mrb[0].mxu0
    %v567 = vadd.f32 0.0, %v566
    %v568 = vpop.f32.mrb[0].mxu0
    %569 = vmatprep.mubr.f32.mxu0 0.0
    %570 = vmatmul.mubr.f32.gmra.mrb[0].mxu0 %v470
    %v571 = vpop.f32.mrb[0].mxu0
    %v572 = vadd.f32 0.0, %v571
    %v573 = vpop.f32.mrb[0].mxu0
    %574 = vmatprep.mubr.f32.mxu0 0.0
    %575 = vmatmul.mubr.f32.gmra.mrb[0].mxu0 %v473
    %v576 = vpop.f32.mrb[0].mxu0
    %v577 = vadd.f32 0.0, %v576
    %v578 = vpop.f32.mrb[0].mxu0
    %579 = vdwg.mxu0
    %582 = vrot.lane.b32.xlu0 %v552, 8
    %v583 = vpop.permute.xlu0 %582
    %584 = vrot.lane.b32.xlu0 %v557, 8
    %v585 = vpop.permute.xlu0 %584
    %590 = vrot.lane.b32.xlu0 %v562, 16
    %v591 = vpop.permute.xlu0 %590
    %592 = vrot.lane.b32.xlu0 %v567, 16
    %v593 = vpop.permute.xlu0 %592
    %598 = vrot.lane.b32.xlu0 %v572, 24
    %v599 = vpop.permute.xlu0 %598
    %600 = vrot.lane.b32.xlu0 %v577, 24
    %v601 = vpop.permute.xlu0 %600
    %v604 = vsel %vm200, %v542, %v583
    %v605 = vsel %vm200, %v547, %v585
    %vm606 = vcmask 130048
    %v607 = vsel %vm606, %v604, %v591
    %v608 = vsel %vm606, %v605, %v593
    %vm609 = vcmask 195584
    %v610 = vsel %vm609, %v607, %v599
    %v611 = vsel %vm609, %v608, %v601
    %616 = vrot.lane.b32.xlu0 %v42, 32
    %v617 = vpop.permute.xlu0 %616
    %618 = vrot.lane.b32.xlu0 %v43, 32
    %v619 = vpop.permute.xlu0 %618
    %620 = vrot.lane.b32.xlu0 %v44, 32
    %v621 = vpop.permute.xlu0 %620
    %622 = vrot.lane.b32.xlu0 %v45, 32
    %v623 = vpop.permute.xlu0 %622
    %629 = vrot.lane.b32.xlu0 %v46, 32
    %v630 = vpop.permute.xlu0 %629
    %v633 = vsel %vm56, %v610, 0
    %v636 = vsel %vm56, %v611, 0
    %638 = vmatprep.subr.mxu0 0.0
    %639 = vmatpush1.msra.mxu0 %v617
    %640 = vmatprep.subr.mxu0 0.0
    %641 = vmatpush1.msra.mxu0 %v619
    %642 = vmatprep.subr.mxu0 0.0
    %643 = vmatpush1.msra.mxu0 %v621
    %644 = vmatprep.subr.mxu0 0.0
    %645 = vmatpush1.msra.mxu0 %v623
    %646 = vmatprep.subr.mxu0 0.0
    %647 = vmatpush1.msra.mxu0 0.0
    %648 = vmatprep.subr.mxu0 0.0
    %649 = vmatpush1.msra.mxu0 0.0
    %650 = vmatprep.subr.mxu0 0.0
    %651 = vmatpush1.msra.mxu0 0.0
    %652 = vmatprep.subr.mxu0 0.0
    %653 = vmatpush1.msra.mxu0 0.0
    %654 = vmatprep.subr.mxu0 0.0
    %655 = vmatpush1.msra.mxu0 0.0
    %656 = vmatprep.subr.mxu0 0.0
    %657 = vmatpush1.msra.mxu0 0.0
    %658 = vmatprep.subr.mxu0 0.0
    %659 = vmatpush1.msra.mxu0 0.0
    %660 = vmatprep.subr.mxu0 0.0
    %661 = vmatpush1.msra.mxu0 0.0
    %662 = vmatprep.subr.mxu0 0.0
    %663 = vmatpush1.msra.mxu0 0.0
    %664 = vmatprep.subr.mxu0 0.0
    %665 = vmatpush1.msra.mxu0 0.0
    %666 = vmatprep.subr.mxu0 0.0
    %667 = vmatpush1.msra.mxu0 0.0
    %668 = vmatprep.subr.mxu0 0.0
    %669 = vmatpush1.msra.mxu0 0.0
    %670 = vmatprep.subr.mxu0 0.0
    %671 = vmatpush1.msra.mxu0 0.0
    %672 = vmatprep.subr.mxu0 0.0
    %673 = vmatpush1.msra.mxu0 0.0
    %674 = vmatprep.subr.mxu0 0.0
    %675 = vmatpush1.msra.mxu0 0.0
    %676 = vmatprep.subr.mxu0 0.0
    %677 = vmatpush1.msra.mxu0 0.0
    %678 = vmatprep.subr.mxu0 0.0
    %679 = vmatpush1.msra.mxu0 0.0
    %680 = vmatprep.subr.mxu0 0.0
    %681 = vmatpush1.msra.mxu0 0.0
    %682 = vmatprep.subr.mxu0 0.0
    %683 = vmatpush1.msra.mxu0 0.0
    %684 = vmatprep.subr.mxu0 0.0
    %685 = vmatpush1.msra.mxu0 0.0
    %686 = vmatprep.subr.mxu0 0.0
    %687 = vmatpush1.msra.mxu0 0.0
    %688 = vmatprep.subr.mxu0 0.0
    %689 = vmatpush1.msra.mxu0 0.0
    %690 = vmatprep.subr.mxu0 0.0
    %691 = vmatpush1.msra.mxu0 0.0
    %692 = vmatprep.subr.mxu0 0.0
    %693 = vmatpush1.msra.mxu0 0.0
    %694 = vmatprep.subr.mxu0 0.0
    %695 = vmatpush1.msra.mxu0 0.0
    %696 = vmatprep.subr.mxu0 0.0
    %697 = vmatpush1.msra.mxu0 0.0
    %698 = vmatprep.subr.mxu0 0.0
    %699 = vmatpush1.msra.mxu0 0.0
    %700 = vmatprep.subr.mxu0 0.0
    %701 = vmatpush1.msra.mxu0 0.0
    %702 = vmatprep.mubr.f32.mxu0 0.0
    %703 = vmatmul.mubr.f32.gmra.mrb[0].mxu0 %v633
    %v704 = vpop.f32.mrb[0].mxu0
    %v705 = vadd.f32 %v630, %v704
    %v706 = vpop.f32.mrb[0].mxu0
    %707 = vmatprep.mubr.f32.mxu0 0.0
    %708 = vmatmul.mubr.f32.gmra.mrb[0].mxu0 %v636
    %v709 = vpop.f32.mrb[0].mxu0
    %v710 = vadd.f32 %v630, %v709
    %v711 = vpop.f32.mrb[0].mxu0
    %712 = vdwg.mxu0
    %v713 = vadd.f32 %v40, %v705
    %v714 = vadd.f32 %v41, %v710
    %v715 = vmul.f32 %v713, %v713
    %v716 = vmul.f32 %v714, %v714
    %v717 = vsel %vm56, %v715, 0.0
    %718 = vadd.xlane.f32.xlu0 %v717
    %v719 = vpop.xlane.xlu0 %718
    %v720 = vsel %vm56, %v716, 0.0
    %721 = vadd.xlane.f32.xlu0 %v720
    %v722 = vpop.xlane.xlu0 %721
    %v723 = vrcp.pop 32.0
    %v724 = vmul.f32 %v719, %v723
    %v725 = vmul.f32 %v722, %v723
    %v726 = vadd.f32 %v724, 1e-05
    %v727 = vadd.f32 %v725, 1e-05
    %v728 = vrsqrt.pop %v726
    %v729 = vrsqrt.pop %v727
    %v730 = vmul.f32 %v713, %v728
    %v731 = vmul.f32 %v714, %v729
    %v732 = vmul.f32 %v730, %v51
    %v733 = vmul.f32 %v731, %v51
    %v735 = vsel %vm56, %v732, 0
    %v738 = vsel %vm56, %v733, 0
    %740 = vmatprep.subr.mxu0 0.0
    %741 = vmatpush1.msra.mxu0 %v47
    %742 = vmatprep.subr.mxu0 0.0
    %743 = vmatpush1.msra.mxu0 %v48
    %744 = vmatprep.subr.mxu0 0.0
    %745 = vmatpush1.msra.mxu0 %v49
    %746 = vmatprep.subr.mxu0 0.0
    %747 = vmatpush1.msra.mxu0 %v50
    %748 = vmatprep.subr.mxu0 0.0
    %749 = vmatpush1.msra.mxu0 0.0
    %750 = vmatprep.subr.mxu0 0.0
    %751 = vmatpush1.msra.mxu0 0.0
    %752 = vmatprep.subr.mxu0 0.0
    %753 = vmatpush1.msra.mxu0 0.0
    %754 = vmatprep.subr.mxu0 0.0
    %755 = vmatpush1.msra.mxu0 0.0
    %756 = vmatprep.subr.mxu0 0.0
    %757 = vmatpush1.msra.mxu0 0.0
    %758 = vmatprep.subr.mxu0 0.0
    %759 = vmatpush1.msra.mxu0 0.0
    %760 = vmatprep.subr.mxu0 0.0
    %761 = vmatpush1.msra.mxu0 0.0
    %762 = vmatprep.subr.mxu0 0.0
    %763 = vmatpush1.msra.mxu0 0.0
    %764 = vmatprep.subr.mxu0 0.0
    %765 = vmatpush1.msra.mxu0 0.0
    %766 = vmatprep.subr.mxu0 0.0
    %767 = vmatpush1.msra.mxu0 0.0
    %768 = vmatprep.subr.mxu0 0.0
    %769 = vmatpush1.msra.mxu0 0.0
    %770 = vmatprep.subr.mxu0 0.0
    %771 = vmatpush1.msra.mxu0 0.0
    %772 = vmatprep.subr.mxu0 0.0
    %773 = vmatpush1.msra.mxu0 0.0
    %774 = vmatprep.subr.mxu0 0.0
    %775 = vmatpush1.msra.mxu0 0.0
    %776 = vmatprep.subr.mxu0 0.0
    %777 = vmatpush1.msra.mxu0 0.0
    %778 = vmatprep.subr.mxu0 0.0
    %779 = vmatpush1.msra.mxu0 0.0
    %780 = vmatprep.subr.mxu0 0.0
    %781 = vmatpush1.msra.mxu0 0.0
    %782 = vmatprep.subr.mxu0 0.0
    %783 = vmatpush1.msra.mxu0 0.0
    %784 = vmatprep.subr.mxu0 0.0
    %785 = vmatpush1.msra.mxu0 0.0
    %786 = vmatprep.subr.mxu0 0.0
    %787 = vmatpush1.msra.mxu0 0.0
    %788 = vmatprep.subr.mxu0 0.0
    %789 = vmatpush1.msra.mxu0 0.0
    %790 = vmatprep.subr.mxu0 0.0
    %791 = vmatpush1.msra.mxu0 0.0
    %792 = vmatprep.subr.mxu0 0.0
    %793 = vmatpush1.msra.mxu0 0.0
    %794 = vmatprep.subr.mxu0 0.0
    %795 = vmatpush1.msra.mxu0 0.0
    %796 = vmatprep.subr.mxu0 0.0
    %797 = vmatpush1.msra.mxu0 0.0
    %798 = vmatprep.subr.mxu0 0.0
    %799 = vmatpush1.msra.mxu0 0.0
    %800 = vmatprep.subr.mxu0 0.0
    %801 = vmatpush1.msra.mxu0 0.0
    %802 = vmatprep.subr.mxu0 0.0
    %803 = vmatpush1.msra.mxu0 0.0
    %804 = vmatprep.mubr.f32.mxu0 0.0
    %805 = vmatmul.mubr.f32.gmra.mrb[0].mxu0 %v735
    %v806 = vpop.f32.mrb[0].mxu0
    %v807 = vadd.f32 0.0, %v806
    %v808 = vpop.f32.mrb[0].mxu0
    %809 = vmatprep.mubr.f32.mxu0 0.0
    %810 = vmatmul.mubr.f32.gmra.mrb[0].mxu0 %v738
    %v811 = vpop.f32.mrb[0].mxu0
    %v812 = vadd.f32 0.0, %v811
    %v813 = vpop.f32.mrb[0].mxu0
    %814 = vdwg.mxu0
    %v815 = vadd.f32 %v732, %v807
    %v816 = vadd.f32 %v733, %v812
    %v817 = vmul.f32 %v815, %v815
    %v818 = vmul.f32 %v816, %v816
    %v819 = vsel %vm56, %v817, 0.0
    %820 = vadd.xlane.f32.xlu0 %v819
    %v821 = vpop.xlane.xlu0 %820
    %v822 = vsel %vm56, %v818, 0.0
    %823 = vadd.xlane.f32.xlu0 %v822
    %v824 = vpop.xlane.xlu0 %823
    %v825 = vmul.f32 %v821, %v723
    %v826 = vmul.f32 %v824, %v723
    %v827 = vadd.f32 %v825, 1e-05
    %v828 = vadd.f32 %v826, 1e-05
    %v829 = vrsqrt.pop %v827
    %v830 = vrsqrt.pop %v828
    %v831 = vmul.f32 %v815, %v829
    %v832 = vmul.f32 %v816, %v830
    %834 = vrot.lane.b32.xlu0 %v51, 96
    %v835 = vpop.permute.xlu0 %834
    %v837 = vmul.f32 %v831, %v835
    %v838 = vmul.f32 %v832, %v835
    %839 = vst.msk [vmem:[#allocation7] sm:$0xff] %vm56, %v837
    %840 = vst.msk [vmem:[#allocation7 + $0x8] sm:$0xff] %vm56, %v838
    // Predicated region
    $region18: #{tpu_custom_call.1} parent=1 // pred_check
      _
    $region19: #{tpu_custom_call.1} parent=1 // pred_check_branch
      %842 = sbr.rel (0) target = $region21
    $region20: #{tpu_custom_call.1} parent=1 // pred_region
      %s844 = ssub.s32 256, 256
      %845 = vsyncadd [#allocation4], %s844
      %s846 = sshll.u32 [#allocation7], 4
      %s847 = int_to_ptr.vmem [resolvable:$true] %s846
      %852 = dma.vmem_to_hbm [thread:$0]  %s847, 256, %s2, [#allocation4], 128, 128, 8
    $region21: #{tpu_custom_call.1} parent=1 // pred_fallthru
      _
    // Predicated region
    $region22: #{tpu_custom_call.1} parent=1 // pred_check
      _
    $region23: #{tpu_custom_call.1} parent=1 // pred_check_branch
      %854 = sbr.rel (0) target = $region25
    $region24: #{tpu_custom_call.1} parent=1 // pred_region
      %855 = dma.done [#allocation4], 256
    $region25: #{tpu_custom_call.1} parent=1 // pred_fallthru
      _
    %856 = vsyncpa [#allocation3], 1
    %857 = vsyncpa [#allocation6], 1
    %858 = vsyncpa [#allocation4], 1

</llo_original>
